<compile_context>
chip_gen: v6e
topology: v6e:2x2x1
jax: 0.10.0
libtpu: 0.0.40
codegen_flags: <defaults>
</compile_context>

<pallas_src>
import math

import jax
import jax.numpy as jnp
import numpy as np
from jax import lax
from jax.experimental import pallas as pl
from jax.experimental.pallas import tpu as pltpu


def _downsample1d_kernel(xe_ref, xo_ref, bprev_ref, w_ref, b_ref, o_ref):
    # xe_ref:    (C, TL)    even input positions x[:, 2t]    -> tap k=1
    # xo_ref:    (C, TL)    odd  input positions x[:, 2t+1]  -> tap k=2
    # bprev_ref: (C, 1)     x_odd column just left of this tile (0 for tile 0 = left pad)
    # w_ref:     (3, C, C)  conv weight, w_ref[k] == W[:, :, k]
    # b_ref:     (C, 1)     bias
    # o_ref:     (C, TL)    output tile
    xe = xe_ref[...]
    xo = xo_ref[...]

    # Tap k=0 reads x[:, 2t-1] = x_odd[t-1]: shift right by one lane on the XLU, then patch
    # lane 0 with the carried-in boundary column (the wrapped-around lane is overwritten).
    x_prev = pltpu.roll(xo, shift=1, axis=1)
    lane = lax.broadcasted_iota(jnp.int32, x_prev.shape, 1)
    x_prev = jnp.where(lane == 0, bprev_ref[...], x_prev)

    acc = jnp.dot(w_ref[1], xe, preferred_element_type=jnp.float32)
    acc = acc + jnp.dot(w_ref[2], xo, preferred_element_type=jnp.float32)
    acc = acc + jnp.dot(w_ref[0], x_prev, preferred_element_type=jnp.float32)
    acc = acc + b_ref[...].astype(jnp.float32)
    o_ref[...] = acc.astype(o_ref.dtype)


def _vmem_capacity_bytes():
    try:
        return int(pltpu.get_tpu_info().vmem_capacity_bytes)
    except Exception:
        return 64 << 20  # conservative (v7x-sized) fallback


def _plan_tiling(C, l_out, esize, lane_tile=None):
    """Pick the lane tile TL and a Mosaic VMEM limit from the chip's real VMEM capacity."""
    cap = _vmem_capacity_bytes()
    # Pipeline-footprint budget: ~half of physical VMEM minus headroom
    # (~28 MiB on v7x's 64 MiB, capped at 56 MiB on v5e/v6e's 128 MiB).
    budget = max(min(cap // 2 - (4 << 20), 56 << 20), 8 << 20)

    def footprint(tl):
        io_tiles = 2 * 3 * C * tl * esize           # double-buffered xe/xo inputs + output
        weights = 2 * (3 * C * C + C + C) * esize   # (3,C,C) + bias + boundary, 2 buffers
        temps = C * tl * (4 + esize)                # f32 accumulator + rolled-tap temp
        return io_tiles + weights + temps + (1 << 20)

    if l_out < 128:
        tl = l_out                       # single lane-masked tile; block dim == array dim
    elif lane_tile is not None:
        tl = lane_tile                   # test / tuning override (multiple of 128)
    else:
        tl = 128                         # keeps per-row DMA chunks >= 512 B even in f32
        for cand in (2048, 1024, 512, 256):
            if footprint(cand) <= budget:
                tl = cand
                break
        tl = min(tl, ((l_out + 127) // 128) * 128)  # don't request far more lanes than exist
    n_l = -(-l_out // tl)
    vmem_limit = int(min(max(2 * footprint(tl), 32 << 20), cap - (2 << 20)))
    return tl, n_l, vmem_limit


def downsample1d(x, weight, bias, *, lane_tile=None):
    """x: (B, C, L), weight: (C, C, 3), bias: (C,) -> (B, C, (L+1)//2).

    Equivalent to nn.Conv1d(C, C, kernel_size=3, stride=2, padding=1). Output dtype follows
    x.dtype (pass bf16 x for half HBM traffic / full-rate MXU); accumulation is always f32.
    """
    B, C, L = x.shape
    assert weight.shape == (C, C, 3) and bias.shape == (C,)
    out_dtype = x.dtype
    l_out = (L + 1) // 2

    # Make L even by appending one zero column; for odd L this IS the conv's right pad.
    if L % 2 == 1:
        x = jnp.pad(x, ((0, 0), (0, 0), (0, 1)))

    # Deinterleave even/odd positions (one XLA pass, same total bytes as x).
    xr = x.reshape(B, C, l_out, 2)
    x_even = xr[..., 0]                  # x[:, :, 0::2]  -> tap k=1
    x_odd = xr[..., 1]                   # x[:, :, 1::2]  -> tap k=2

    esize = jnp.dtype(x.dtype).itemsize
    tl, n_l, vmem_limit = _plan_tiling(C, l_out, esize, lane_tile)

    # Per-tile boundary column for tap k=0: x_odd just left of each tile's first output
    # (zero for the first tile = conv left pad). Shaped (B, n_l, C, 1) so the last two
    # block dims equal the array dims (tile index stays a leading, squeezed dim).
    starts = np.arange(n_l) * tl
    prev_idx = np.maximum(starts - 1, 0)
    bprev = x_odd[:, :, prev_idx]                            # (B, C, n_l) static gather
    bprev = bprev.at[:, :, 0].set(0)
    bprev = jnp.transpose(bprev, (0, 2, 1))[:, :, :, None]   # (B, n_l, C, 1)

    # Lane-dense weight, k-major leading axis: w_fused[k] == W[:, :, k]  (C_out, C_in).
    w_fused = jnp.transpose(weight, (2, 0, 1)).astype(x.dtype)
    bias2d = bias.reshape(C, 1)

    flops = 2 * 3 * C * C * l_out * B
    bytes_accessed = esize * (3 * B * C * l_out + 3 * C * C + C + B * C * n_l)
    cost = pl.CostEstimate(flops=int(flops), transcendentals=0,
                           bytes_accessed=int(bytes_accessed))

    return pl.pallas_call(
        _downsample1d_kernel,
        out_shape=jax.ShapeDtypeStruct((B, C, l_out), out_dtype),
        grid_spec=pltpu.PrefetchScalarGridSpec(
            num_scalar_prefetch=0,
            grid=(B, n_l),
            in_specs=[
                pl.BlockSpec((None, C, tl), lambda b, j: (b, 0, j)),        # x_even
                pl.BlockSpec((None, C, tl), lambda b, j: (b, 0, j)),        # x_odd
                pl.BlockSpec((None, None, C, 1), lambda b, j: (b, j, 0, 0)),  # boundary col
                pl.BlockSpec((3, C, C), lambda b, j: (0, 0, 0)),            # fused weight
                pl.BlockSpec((C, 1), lambda b, j: (0, 0)),                  # bias
            ],
            out_specs=pl.BlockSpec((None, C, tl), lambda b, j: (b, 0, j)),
        ),
        compiler_params=pltpu.CompilerParams(
            dimension_semantics=("parallel", "parallel"),
            vmem_limit_bytes=vmem_limit,
        ),
        cost_estimate=cost,
    )(x_even, x_odd, bprev, w_fused, bias2d)


def reference_downsample1d(x, weight, bias):
    # Pure-JAX reference (NCL conv, stride 2, padding 1), highest precision for comparison.
    out = lax.conv_general_dilated(
        x, weight, window_strides=(2,), padding=((1, 1),),
        dimension_numbers=("NCH", "OIH", "NCH"),
        precision=lax.Precision.HIGHEST)
    return out + bias[None, :, None]


if __name__ == "__main__":
    key = jax.random.PRNGKey(0)
    kx, kw, kb, kx2, kx3 = jax.random.split(key, 5)

    B, C, L = 2, 4, 16
    x = jax.random.normal(kx, (B, C, L), dtype=jnp.float32)

    # Deterministic init mimicking nn.Conv1d default (uniform(-1/sqrt(fan_in), 1/sqrt(fan_in)))
    fan_in = C * 3
    bound = 1.0 / math.sqrt(fan_in)
    weight = jax.random.uniform(kw, (C, C, 3), minval=-bound, maxval=bound, dtype=jnp.float32)
    bias = jax.random.uniform(kb, (C,), minval=-bound, maxval=bound, dtype=jnp.float32)

    out = jax.block_until_ready(downsample1d(x, weight, bias))
    ref = reference_downsample1d(x, weight, bias)
    assert out.shape == (B, C, L // 2), out.shape
    assert jnp.allclose(out, ref, atol=1e-4, rtol=1e-4), "mismatch vs reference"

    # Odd-length input (right pad handled via the even-length trick).
    x2 = jax.random.normal(kx2, (1, C, 9), dtype=jnp.float32)
    out2 = jax.block_until_ready(downsample1d(x2, weight, bias))
    ref2 = reference_downsample1d(x2, weight, bias)
    assert out2.shape == ref2.shape, (out2.shape, ref2.shape)
    assert jnp.allclose(out2, ref2, atol=1e-4, rtol=1e-4), "mismatch vs reference (odd L)"

    # Multi-tile + ragged-last-tile path: exercises the in-kernel roll boundary carry.
    C3 = 8
    x3 = jax.random.normal(kx3, (1, C3, 600), dtype=jnp.float32)
    b3 = 1.0 / math.sqrt(C3 * 3)
    w3 = jax.random.uniform(kw, (C3, C3, 3), minval=-b3, maxval=b3, dtype=jnp.float32)
    bias3 = jax.random.uniform(kb, (C3,), minval=-b3, maxval=b3, dtype=jnp.float32)
    out3 = jax.block_until_ready(downsample1d(x3, w3, bias3, lane_tile=128))
    ref3 = reference_downsample1d(x3, w3, bias3)
    assert out3.shape == ref3.shape, (out3.shape, ref3.shape)
    assert jnp.allclose(out3, ref3, atol=1e-4, rtol=1e-4), "mismatch vs reference (multi-tile)"

    # bf16 fast path (half HBM bytes, full-rate MXU); f32 accumulation inside the kernel.
    out_bf = jax.block_until_ready(downsample1d(x.astype(jnp.bfloat16), weight, bias))
    assert out_bf.dtype == jnp.bfloat16
    assert jnp.allclose(out_bf.astype(jnp.float32), ref, atol=5e-2, rtol=5e-2), \
        "mismatch vs reference (bf16)"

    print("KERNEL_OK")
</pallas_src>

<mosaic_0001>
module attributes {stable_mosaic.version = 11 : i64} {
  func.func @_downsample1d_kernel(%arg0: i32, %arg1: i32, %arg2: memref<1x4x8xf32, #tpu.memory_space<vmem>>, %arg3: memref<1x4x8xf32, #tpu.memory_space<vmem>>, %arg4: memref<1x1x4x1xf32, #tpu.memory_space<vmem>>, %arg5: memref<3x4x4xf32, #tpu.memory_space<vmem>>, %arg6: memref<4x1xf32, #tpu.memory_space<vmem>>, %arg7: memref<1x4x8xf32, #tpu.memory_space<vmem>>) attributes {dimension_semantics = [#tpu.dimension_semantics<parallel>, #tpu.dimension_semantics<parallel>], iteration_bounds = array<i64: 2, 1>, scalar_prefetch = 0 : i64, scratch_operands = 0 : i64, tpu.core_type = #tpu.core_type<tc>, window_params = [{transform_indices = @transform_0, window_bounds = array<i64: 1, 4, 8>}, {transform_indices = @transform_1, window_bounds = array<i64: 1, 4, 8>}, {transform_indices = @transform_2, window_bounds = array<i64: 1, 1, 4, 1>}, {pipeline_mode = #tpu.pipeline_mode<synchronous>, transform_indices = @transform_3, window_bounds = array<i64: 3, 4, 4>}, {pipeline_mode = #tpu.pipeline_mode<synchronous>, transform_indices = @transform_4, window_bounds = array<i64: 4, 1>}, {transform_indices = @transform_5, window_bounds = array<i64: 1, 4, 8>}]} {
    %c0 = arith.constant 0 : index
    %c0_0 = arith.constant 0 : index
    %c0_1 = arith.constant 0 : index
    %0 = vector.load %arg2[%c0, %c0_0, %c0_1] : memref<1x4x8xf32, #tpu.memory_space<vmem>>, vector<1x4x8xf32>
    %1 = vector.shape_cast %0 : vector<1x4x8xf32> to vector<4x8xf32>
    %c0_2 = arith.constant 0 : index
    %c0_3 = arith.constant 0 : index
    %c0_4 = arith.constant 0 : index
    %2 = vector.load %arg3[%c0_2, %c0_3, %c0_4] : memref<1x4x8xf32, #tpu.memory_space<vmem>>, vector<1x4x8xf32>
    %3 = vector.shape_cast %2 : vector<1x4x8xf32> to vector<4x8xf32>
    %c1_i32 = arith.constant 1 : i32
    %4 = tpu.dynamic_rotate %3 by %c1_i32 dim 1 : vector<4x8xf32>, i32 -> vector<4x8xf32>
    %5 = tpu.iota {dimensions = array<i32: 1>} : vector<4x8xi32>
    %c0_i32 = arith.constant 0 : i32
    %6 = vector.broadcast %c0_i32 : i32 to vector<4x8xi32>
    %7 = arith.cmpi eq, %5, %6 : vector<4x8xi32>
    %c0_5 = arith.constant 0 : index
    %c0_6 = arith.constant 0 : index
    %c0_7 = arith.constant 0 : index
    %c0_8 = arith.constant 0 : index
    %8 = vector.load %arg4[%c0_5, %c0_6, %c0_7, %c0_8] : memref<1x1x4x1xf32, #tpu.memory_space<vmem>>, vector<1x1x4x1xf32>
    %9 = vector.shape_cast %8 : vector<1x1x4x1xf32> to vector<4x1xf32>
    %10 = vector.shape_cast %9 : vector<4x1xf32> to vector<4x1xf32>
    %11 = vector.broadcast %10 : vector<4x1xf32> to vector<4x8xf32>
    %12 = arith.select %7, %11, %4 : vector<4x8xi1>, vector<4x8xf32>
    %c1 = arith.constant 1 : index
    %c0_9 = arith.constant 0 : index
    %c0_10 = arith.constant 0 : index
    %13 = vector.load %arg5[%c1, %c0_9, %c0_10] : memref<3x4x4xf32, #tpu.memory_space<vmem>>, vector<1x4x4xf32>
    %14 = vector.shape_cast %13 : vector<1x4x4xf32> to vector<4x4xf32>
    %cst = arith.constant dense<0.000000e+00> : vector<4x8xf32>
    %15 = tpu.matmul %14, %1, %cst {dimension_numbers = #tpu.dot_dimension_numbers<[1], [0], [0], [1], [0, 0, 1, 1], [], []>} : vector<4x4xf32>, vector<4x8xf32>, vector<4x8xf32> -> vector<4x8xf32>
    %c2 = arith.constant 2 : index
    %c0_11 = arith.constant 0 : index
    %c0_12 = arith.constant 0 : index
    %16 = vector.load %arg5[%c2, %c0_11, %c0_12] : memref<3x4x4xf32, #tpu.memory_space<vmem>>, vector<1x4x4xf32>
    %17 = vector.shape_cast %16 : vector<1x4x4xf32> to vector<4x4xf32>
    %cst_13 = arith.constant dense<0.000000e+00> : vector<4x8xf32>
    %18 = tpu.matmul %17, %3, %cst_13 {dimension_numbers = #tpu.dot_dimension_numbers<[1], [0], [0], [1], [0, 0, 1, 1], [], []>} : vector<4x4xf32>, vector<4x8xf32>, vector<4x8xf32> -> vector<4x8xf32>
    %19 = arith.addf %15, %18 : vector<4x8xf32>
    %c0_14 = arith.constant 0 : index
    %c0_15 = arith.constant 0 : index
    %c0_16 = arith.constant 0 : index
    %20 = vector.load %arg5[%c0_14, %c0_15, %c0_16] : memref<3x4x4xf32, #tpu.memory_space<vmem>>, vector<1x4x4xf32>
    %21 = vector.shape_cast %20 : vector<1x4x4xf32> to vector<4x4xf32>
    %cst_17 = arith.constant dense<0.000000e+00> : vector<4x8xf32>
    %22 = tpu.matmul %21, %12, %cst_17 {dimension_numbers = #tpu.dot_dimension_numbers<[1], [0], [0], [1], [0, 0, 1, 1], [], []>} : vector<4x4xf32>, vector<4x8xf32>, vector<4x8xf32> -> vector<4x8xf32>
    %23 = arith.addf %19, %22 : vector<4x8xf32>
    %c0_18 = arith.constant 0 : index
    %c0_19 = arith.constant 0 : index
    %24 = vector.load %arg6[%c0_18, %c0_19] : memref<4x1xf32, #tpu.memory_space<vmem>>, vector<4x1xf32>
    %25 = vector.broadcast %24 : vector<4x1xf32> to vector<4x8xf32>
    %26 = arith.addf %23, %25 : vector<4x8xf32>
    %c0_20 = arith.constant 0 : index
    %c0_21 = arith.constant 0 : index
    %c0_22 = arith.constant 0 : index
    %27 = vector.load %arg7[%c0_20, %c0_21, %c0_22] : memref<1x4x8xf32, #tpu.memory_space<vmem>>, vector<1x4x8xf32>
    %28 = vector.shape_cast %27 : vector<1x4x8xf32> to vector<4x8xf32>
    %29 = vector.shape_cast %26 : vector<4x8xf32> to vector<1x4x8xf32>
    tpu.vector_store %arg7[%c0_20, %c0_21, %c0_22], %29 {strides = array<i32>} : memref<1x4x8xf32, #tpu.memory_space<vmem>>, vector<1x4x8xf32>,
    return
  }
  func.func @transform_0(%arg0: i32, %arg1: i32) -> (i32, i32, i32) {
    %c0_i32 = arith.constant 0 : i32
    %c0_i32_0 = arith.constant 0 : i32
    return %arg0, %c0_i32, %arg1 : i32, i32, i32
  }
  func.func @transform_1(%arg0: i32, %arg1: i32) -> (i32, i32, i32) {
    %c0_i32 = arith.constant 0 : i32
    %c0_i32_0 = arith.constant 0 : i32
    return %arg0, %c0_i32, %arg1 : i32, i32, i32
  }
  func.func @transform_2(%arg0: i32, %arg1: i32) -> (i32, i32, i32, i32) {
    %c0_i32 = arith.constant 0 : i32
    %c0_i32_0 = arith.constant 0 : i32
    %c0_i32_1 = arith.constant 0 : i32
    return %arg0, %arg1, %c0_i32, %c0_i32_0 : i32, i32, i32, i32
  }
  func.func @transform_3(%arg0: i32, %arg1: i32) -> (i32, i32, i32) {
    %c0_i32 = arith.constant 0 : i32
    %c0_i32_0 = arith.constant 0 : i32
    %c0_i32_1 = arith.constant 0 : i32
    %c0_i32_2 = arith.constant 0 : i32
    return %c0_i32, %c0_i32_0, %c0_i32_1 : i32, i32, i32
  }
  func.func @transform_4(%arg0: i32, %arg1: i32) -> (i32, i32) {
    %c0_i32 = arith.constant 0 : i32
    %c0_i32_0 = arith.constant 0 : i32
    %c0_i32_1 = arith.constant 0 : i32
    return %c0_i32, %c0_i32_0 : i32, i32
  }
  func.func @transform_5(%arg0: i32, %arg1: i32) -> (i32, i32, i32) {
    %c0_i32 = arith.constant 0 : i32
    %c0_i32_0 = arith.constant 0 : i32
    return %arg0, %c0_i32, %arg1 : i32, i32, i32
  }
}

</mosaic_0001>

<llo_original>
// kernel: tpu_custom_call.1
$region0: #{tpu_custom_call.1}
  #allocation0 [shape = 'u32[]', space=smem, size = 0x4, offset = 0x4, fixed_abs, tag = 'smem constant byte address 0x4 - core index']
  #allocation1 [shape = 'u32[144,128]{1,0:T(1,128)}', space=vmem, size = 0x12000, scoped, tag = 'internal scratch']
  %s0 = inlined_call_operand.vmem [shape: f32[2,4,8], index: 0, kind: input, shape index: {}]
  %s1 = inlined_call_operand.hbm [shape: f32[2,4,8], index: 1, kind: input, shape index: {}]
  %s2 = inlined_call_operand.vmem [shape: f32[2,1,4,1], index: 2, kind: input, shape index: {}]
  %s3 = inlined_call_operand.vmem [shape: f32[3,4,4], index: 3, kind: input, shape index: {}]
  %s4 = inlined_call_operand.vmem [shape: f32[4,1], index: 4, kind: input, shape index: {}]
  %s5 = inlined_call_operand.hbm [shape: f32[2,4,8], index: 5, kind: output, shape index: {}]
  %s6 = sld [smem:[#allocation0]]
  $region57: #{tpu_custom_call.1} parent=0
    _
  %s8 = ssub.s32 1, %s6
  %s9 = scalar_select 0, %s8, %s6
  $region1: #{tpu_custom_call.1} parent=0
    #allocation2 [shape = 'u8[4096]{0}', space=vmem, size = 0x1000, scoped, tag = 'input window, operand 1']
    #allocation3 [shape = 's32[2]{0}', space=sflag, size = 0x8, scoped, tag = 'scoped memory for tpu_custom_call.1']
    #allocation4 [shape = 's32[2]{0}', space=sflag, size = 0x8, scoped, tag = 'scoped memory for tpu_custom_call.1']
    #allocation5 [shape = 'u8[4096]{0}', space=vmem, size = 0x1000, scoped, tag = 'output window, operand 0']
    %10 = vsyncpa [#allocation3], 0
    %s11 = scalar_lea.sflag [#allocation3], 1
    %12 = vsyncpa %s11, 0
    %13 = vsyncpa [#allocation4], 0
    %s14 = scalar_lea.sflag [#allocation4], 1
    %15 = vsyncpa %s14, 0
    loop: start=0, step=1, limit=4
    $region2: #{tpu_custom_call.1} parent=1 // loop_pre_header
      _
    $region3: #{tpu_custom_call.1} parent=1 // loop_header
      %s17 = sphi 0, %s21
      %p18 = scmp.ge.s32.totalorder %s17, 4
      %s24 = sphi 0, %s36
      %s25 = sphi 0, %s32
      %s26 = sphi 0, %s24
      %s27 = sphi 0, %s25
      %s28 = sphi 0, %s26
      %s29 = sphi 0, %s27
      %s41 = sphi 0, %s43
      %s44 = sphi 0, %s41
      %s45 = sphi 0, %s44
      %s61 = sphi 0, %s45
      %s69 = sphi 0, %s71
      %s72 = sphi 0, %s69
      %s73 = sphi 0, %s72
      %s89 = sphi 0, %s73
      %s97 = sphi 0, %s99
      %s100 = sphi 0, %s97
      %s101 = sphi 0, %s100
      %s117 = sphi 0, %s101
      %s121 = sphi 0, %s121
      %s123 = sphi 0, %s121
      %s124 = sphi 0, %s123
      %s138 = sphi 0, %s124
      %s142 = sphi 0, %s142
      %s144 = sphi 0, %s142
      %s145 = sphi 0, %s144
      %s159 = sphi 0, %s145
      %s167 = sphi 0, %s169
      %s170 = sphi 0, %s167
      %s171 = sphi 0, %s170
      %s187 = sphi 0, %s171
    $region4: #{tpu_custom_call.1} parent=1 // loop_header_branch
      %20 = sbr.rel (%p18) target = $region8
    $region5: #{tpu_custom_call.1} parent=1 // loop_body
      %s22 = ssub.s32 %s17, 1
      %s23 = ssub.s32 %s17, 2
      %s30 = sadd.s32 1, %s25
      %p31 = scmp.ge.s32.totalorder %s30, 1
      %s32 = scalar_select %p31, 0, %s30
      %s33 = sadd.s32 1, %s24
      %s34 = scalar_select %p31, %s33, %s24
      %p35 = scmp.ge.s32.totalorder %s34, 2
      %s36 = scalar_select %p35, 0, %s34
      %s37 = ssub.s32 %s24, %s36
      %s38 = ssub.s32 %s25, %s32
      %s39 = sor.u32 %s37, %s38
      %p40 = scmp.eq.s32.totalorder %s39, 0
      %s42 = sadd.s32 %s41, 1
      %s43 = scalar_select %p40, %s41, %s42
      %p46 = pneg %p40
      %p47 = scmp.eq.s32.totalorder %s17, 1
      %p48 = por %p46, %p47
      %p49 = scmp.ne.s32.totalorder %s41, %s44
      %p50 = scmp.eq.s32.totalorder %s17, 0
      %p51 = por %p49, %p50
      %p52 = scmp.ne.s32.totalorder %s41, %s44
      %p53 = scmp.eq.s32.totalorder %s22, 1
      %p54 = por %p52, %p53
      %p55 = scmp.ne.s32.totalorder %s44, %s45
      %p56 = scmp.eq.s32.totalorder %s22, 0
      %p57 = por %p55, %p56
      %p58 = scmp.ne.s32.totalorder %s44, %s45
      %p59 = scmp.eq.s32.totalorder %s23, 1
      %p60 = por %p58, %p59
      %p62 = scmp.ne.s32.totalorder %s45, %s61
      %p63 = scmp.eq.s32.totalorder %s23, 0
      %p64 = por %p62, %p63
      %s65 = ssub.s32 %s24, %s36
      %s66 = ssub.s32 %s25, %s32
      %s67 = sor.u32 %s65, %s66
      %p68 = scmp.eq.s32.totalorder %s67, 0
      %s70 = sadd.s32 %s69, 1
      %s71 = scalar_select %p68, %s69, %s70
      %p74 = pneg %p68
      %p75 = scmp.eq.s32.totalorder %s17, 1
      %p76 = por %p74, %p75
      %p77 = scmp.ne.s32.totalorder %s69, %s72
      %p78 = scmp.eq.s32.totalorder %s17, 0
      %p79 = por %p77, %p78
      %p80 = scmp.ne.s32.totalorder %s69, %s72
      %p81 = scmp.eq.s32.totalorder %s22, 1
      %p82 = por %p80, %p81
      %p83 = scmp.ne.s32.totalorder %s72, %s73
      %p84 = scmp.eq.s32.totalorder %s22, 0
      %p85 = por %p83, %p84
      %p86 = scmp.ne.s32.totalorder %s72, %s73
      %p87 = scmp.eq.s32.totalorder %s23, 1
      %p88 = por %p86, %p87
      %p90 = scmp.ne.s32.totalorder %s73, %s89
      %p91 = scmp.eq.s32.totalorder %s23, 0
      %p92 = por %p90, %p91
      %s93 = ssub.s32 %s24, %s36
      %s94 = ssub.s32 %s25, %s32
      %s95 = sor.u32 %s93, %s94
      %p96 = scmp.eq.s32.totalorder %s95, 0
      %s98 = sadd.s32 %s97, 1
      %s99 = scalar_select %p96, %s97, %s98
      %p102 = pneg %p96
      %p103 = scmp.eq.s32.totalorder %s17, 1
      %p104 = por %p102, %p103
      %p105 = scmp.ne.s32.totalorder %s97, %s100
      %p106 = scmp.eq.s32.totalorder %s17, 0
      %p107 = por %p105, %p106
      %p108 = scmp.ne.s32.totalorder %s97, %s100
      %p109 = scmp.eq.s32.totalorder %s22, 1
      %p110 = por %p108, %p109
      %p111 = scmp.ne.s32.totalorder %s100, %s101
      %p112 = scmp.eq.s32.totalorder %s22, 0
      %p113 = por %p111, %p112
      %p114 = scmp.ne.s32.totalorder %s100, %s101
      %p115 = scmp.eq.s32.totalorder %s23, 1
      %p116 = por %p114, %p115
      %p118 = scmp.ne.s32.totalorder %s101, %s117
      %p119 = scmp.eq.s32.totalorder %s23, 0
      %p120 = por %p118, %p119
      %s122 = sadd.s32 %s121, 1
      %p125 = scmp.eq.s32.totalorder %s17, 1
      %p126 = scmp.ne.s32.totalorder %s121, %s123
      %p127 = scmp.eq.s32.totalorder %s17, 0
      %p128 = por %p126, %p127
      %p129 = scmp.ne.s32.totalorder %s121, %s123
      %p130 = scmp.eq.s32.totalorder %s22, 1
      %p131 = por %p129, %p130
      %p132 = scmp.ne.s32.totalorder %s123, %s124
      %p133 = scmp.eq.s32.totalorder %s22, 0
      %p134 = por %p132, %p133
      %p135 = scmp.ne.s32.totalorder %s123, %s124
      %p136 = scmp.eq.s32.totalorder %s23, 1
      %p137 = por %p135, %p136
      %p139 = scmp.ne.s32.totalorder %s124, %s138
      %p140 = scmp.eq.s32.totalorder %s23, 0
      %p141 = por %p139, %p140
      %s143 = sadd.s32 %s142, 1
      %p146 = scmp.eq.s32.totalorder %s17, 1
      %p147 = scmp.ne.s32.totalorder %s142, %s144
      %p148 = scmp.eq.s32.totalorder %s17, 0
      %p149 = por %p147, %p148
      %p150 = scmp.ne.s32.totalorder %s142, %s144
      %p151 = scmp.eq.s32.totalorder %s22, 1
      %p152 = por %p150, %p151
      %p153 = scmp.ne.s32.totalorder %s144, %s145
      %p154 = scmp.eq.s32.totalorder %s22, 0
      %p155 = por %p153, %p154
      %p156 = scmp.ne.s32.totalorder %s144, %s145
      %p157 = scmp.eq.s32.totalorder %s23, 1
      %p158 = por %p156, %p157
      %p160 = scmp.ne.s32.totalorder %s145, %s159
      %p161 = scmp.eq.s32.totalorder %s23, 0
      %p162 = por %p160, %p161
      %s163 = ssub.s32 %s24, %s36
      %s164 = ssub.s32 %s25, %s32
      %s165 = sor.u32 %s163, %s164
      %p166 = scmp.eq.s32.totalorder %s165, 0
      %s168 = sadd.s32 %s167, 1
      %s169 = scalar_select %p166, %s167, %s168
      %p172 = pneg %p166
      %p173 = scmp.eq.s32.totalorder %s17, 1
      %p174 = por %p172, %p173
      %p175 = scmp.ne.s32.totalorder %s167, %s170
      %p176 = scmp.eq.s32.totalorder %s17, 0
      %p177 = por %p175, %p176
      %p178 = scmp.ne.s32.totalorder %s167, %s170
      %p179 = scmp.eq.s32.totalorder %s22, 1
      %p180 = por %p178, %p179
      %p181 = scmp.ne.s32.totalorder %s170, %s171
      %p182 = scmp.eq.s32.totalorder %s22, 0
      %p183 = por %p181, %p182
      %p184 = scmp.ne.s32.totalorder %s170, %s171
      %p185 = scmp.eq.s32.totalorder %s23, 1
      %p186 = por %p184, %p185
      %p188 = scmp.ne.s32.totalorder %s171, %s187
      %p189 = scmp.eq.s32.totalorder %s23, 0
      %p190 = por %p188, %p189
      %p191 = scmp.le.s32.totalorder 1, %s17
      %p192 = scmp.lt.s32.totalorder %s17, 3
      %p193 = pnand %p191, %p192
      %p194 = pneg %p193
      // Predicated region
      $region9: #{tpu_custom_call.1} parent=5 // pred_check
        _
      $region10: #{tpu_custom_call.1} parent=5 // pred_check_branch
        %196 = sbr.rel (%p193) target = $region12
      $region11: #{tpu_custom_call.1} parent=5 // pred_region
        %s197 = ssub.s32 %s17, 1
        // Predicated region
        $region13: #{tpu_custom_call.1} parent=11 // pred_check
          %p198 = pneg %p134
        $region14: #{tpu_custom_call.1} parent=11 // pred_check_branch
          %200 = sbr.rel (%p198) target = $region16
        $region15: #{tpu_custom_call.1} parent=11 // pred_region
          _
        $region16: #{tpu_custom_call.1} parent=11 // pred_fallthru
          _
        // Predicated region
        $region17: #{tpu_custom_call.1} parent=11 // pred_check
          %p201 = pneg %p155
        $region18: #{tpu_custom_call.1} parent=11 // pred_check_branch
          %203 = sbr.rel (%p201) target = $region20
        $region19: #{tpu_custom_call.1} parent=11 // pred_region
          _
        $region20: #{tpu_custom_call.1} parent=11 // pred_fallthru
          _
      $region12: #{tpu_custom_call.1} parent=5 // pred_fallthru
        _
      %p204 = scmp.lt.s32.totalorder %s17, 2
      // Predicated region
      $region21: #{tpu_custom_call.1} parent=5 // pred_check
        %p205 = pneg %p204
      $region22: #{tpu_custom_call.1} parent=5 // pred_check_branch
        %207 = sbr.rel (%p205) target = $region24
      $region23: #{tpu_custom_call.1} parent=5 // pred_region
        // Predicated region
        $region25: #{tpu_custom_call.1} parent=23 // pred_check
          %p208 = pneg %p51
        $region26: #{tpu_custom_call.1} parent=23 // pred_check_branch
          %210 = sbr.rel (%p208) target = $region28
        $region27: #{tpu_custom_call.1} parent=23 // pred_region
          %p211 = scmp.lt.s32.totalorder %s24, 1
          %s212 = scalar_select %p211, %s24, 1
          %p213 = scmp.lt.s32.totalorder %s25, 0
          %s214 = scalar_select %p213, %s25, 0
          %s215 = sadd.s32 %s214, %s212
          %s216 = smul.addr %s215, 4
          %s217 = scalar_lea.vmem %s0, %s216
        $region28: #{tpu_custom_call.1} parent=23 // pred_fallthru
          _
        // Predicated region
        $region29: #{tpu_custom_call.1} parent=23 // pred_check
          %p218 = pneg %p79
        $region30: #{tpu_custom_call.1} parent=23 // pred_check_branch
          %220 = sbr.rel (%p218) target = $region32
        $region31: #{tpu_custom_call.1} parent=23 // pred_region
          %s221 = sand.u32 %s69, 1
          %s222 = scalar_lea.sflag [#allocation3], %s221
          %s223 = sand.u32 %s69, 1
          %s224 = smul.addr %s223, 4
          %s225 = scalar_lea.vmem [#allocation2], %s224
          %s227 = ssub.s32 64, 64
          %228 = vsyncadd %s222, %s227
          %s229 = sadd.s32 %s25, %s24
          %s230 = smul.addr %s229, 64
          %s231 = scalar_lea.hbm %s1, %s230
          %s233 = sshll.u32 %s225, 4
          %s234 = int_to_ptr.vmem [resolvable:$true] %s233
          %236 = dma.hbm_to_vmem [thread:$0]  %s231, 64, %s234, %s222
        $region32: #{tpu_custom_call.1} parent=23 // pred_fallthru
          _
        // Predicated region
        $region33: #{tpu_custom_call.1} parent=23 // pred_check
          %p237 = pneg %p107
        $region34: #{tpu_custom_call.1} parent=23 // pred_check_branch
          %239 = sbr.rel (%p237) target = $region36
        $region35: #{tpu_custom_call.1} parent=23 // pred_region
          %p240 = scmp.lt.s32.totalorder %s24, 1
          %s241 = scalar_select %p240, %s24, 1
          %p242 = scmp.lt.s32.totalorder %s25, 0
          %s243 = scalar_select %p242, %s25, 0
          %s244 = sadd.s32 %s243, %s241
          %s245 = smul.addr %s244, 4
          %s246 = scalar_lea.vmem %s2, %s245
        $region36: #{tpu_custom_call.1} parent=23 // pred_fallthru
          _
      $region24: #{tpu_custom_call.1} parent=5 // pred_fallthru
        _
      %p247 = scmp.le.s32.totalorder 1, %s17
      %p248 = scmp.lt.s32.totalorder %s17, 3
      %p249 = pnand %p247, %p248
      %p250 = pneg %p249
      // Predicated region
      $region37: #{tpu_custom_call.1} parent=5 // pred_check
        _
      $region38: #{tpu_custom_call.1} parent=5 // pred_check_branch
        %252 = sbr.rel (%p249) target = $region40
      $region39: #{tpu_custom_call.1} parent=5 // pred_region
        %s253 = ssub.s32 %s17, 1
        %s254 = sand.u32 %s72, 1
        %s255 = scalar_lea.sflag [#allocation3], %s254
        %s256 = sand.u32 %s72, 1
        %s257 = smul.addr %s256, 4
        %s258 = scalar_lea.vmem [#allocation2], %s257
        // Predicated region
        $region41: #{tpu_custom_call.1} parent=39 // pred_check
          %p259 = pneg %p85
        $region42: #{tpu_custom_call.1} parent=39 // pred_check_branch
          %261 = sbr.rel (%p259) target = $region44
        $region43: #{tpu_custom_call.1} parent=39 // pred_region
          %262 = dma.done %s255, 64
        $region44: #{tpu_custom_call.1} parent=39 // pred_fallthru
          _
        %p263 = scmp.lt.s32.totalorder %s26, 1
        %s264 = scalar_select %p263, %s26, 1
        %p265 = scmp.lt.s32.totalorder %s27, 0
        %s266 = scalar_select %p265, %s27, 0
        %s267 = sadd.s32 %s266, %s264
        %s268 = smul.addr %s267, 4
        %s269 = scalar_lea.vmem %s0, %s268
        %p270 = pneg %p57
        %p271 = pneg %p54
        %s272 = sand.u32 %s72, 1
        %s273 = scalar_lea.sflag [#allocation3], %s272
        %s274 = sand.u32 %s72, 1
        %s275 = smul.addr %s274, 4
        %s276 = scalar_lea.vmem [#allocation2], %s275
        %p277 = pneg %p85
        %p278 = pneg %p82
        %p279 = scmp.lt.s32.totalorder %s26, 1
        %s280 = scalar_select %p279, %s26, 1
        %p281 = scmp.lt.s32.totalorder %s27, 0
        %s282 = scalar_select %p281, %s27, 0
        %s283 = sadd.s32 %s282, %s280
        %s284 = smul.addr %s283, 4
        %s285 = scalar_lea.vmem %s2, %s284
        %p286 = pneg %p113
        %p287 = pneg %p110
        %p288 = pneg %p134
        %p289 = pneg %p131
        %p290 = pneg %p155
        %p291 = pneg %p152
        %p292 = pneg %p183
        %p293 = pneg %p180
        %s294 = sand.u32 %s170, 1
        %s295 = scalar_lea.sflag [#allocation4], %s294
        %s296 = sand.u32 %s170, 1
        %s297 = smul.addr %s296, 4
        %s298 = scalar_lea.vmem [#allocation5], %s297
        %p299 = scmp.lt.s32.totalorder %s26, 1
        %s300 = scalar_select %p299, %s26, 1
        %p301 = scmp.lt.s32.totalorder %s27, 0
        %s302 = scalar_select %p301, %s27, 0
        %s303 = sadd.s32 %s302, %s300
        %s304 = smul.addr %s303, 4
        %s305 = scalar_lea.vmem %s0, %s304
        %p306 = scmp.lt.s32.totalorder %s26, 1
        %s307 = scalar_select %p306, %s26, 1
        %p308 = scmp.lt.s32.totalorder %s27, 0
        %s309 = scalar_select %p308, %s27, 0
        %s310 = sadd.s32 %s309, %s307
        %s311 = smul.addr %s310, 4
        %s312 = scalar_lea.vmem %s2, %s311
        %v313 = vld [vmem:[%s305] sm:$0xf]
        %v314 = vld [vmem:[%s258] sm:$0xf]
        %vm315 = vcmask 1047616
        %316 = vrot.lane.b32.xlu0 %v314, 8
        %v317 = vpop.permute.xlu0 %316
        %v318 = vsel %vm315, %v317, %v314
        %319 = vrot.lane.b32.xlu0 %v318, 8
        %v320 = vpop.permute.xlu0 %319
        %v321 = vsel %vm315, %v320, %v314
        %v322 = vlaneseq
        %v323 = vand.u32 %v322, 127
        %vm324 = vcmp.eq.s32.totalorder %v323, 0
        %v325 = vld [vmem:[%s312] sm:$0xf]
        %327 = vset.pattern.permute.xlu0 0
        %328 = vperm.xlu0 %327, %v325
        %v329 = vpop.permute.xlu0 %328
        %332 = vrot.lane.b32.xlu0 %v321, 121
        %v333 = vpop.permute.xlu0 %332
        %v335 = vsel %vm324, %v329, %v333
        %s336 = scalar_lea.vmem %s3, 4
        %v337 = vld [vmem:[%s336] sm:$0xf]
        %s338 = scalar_lea.vmem %s3, 8
        %v339 = vld [vmem:[%s338] sm:$0xf]
        %vm340 = vcmask 31744
        %v342 = vsel %vm340, %v339, 0
        %vm344 = vcmask 1043456
        %v346 = vsel %vm344, %v314, 0
        %348 = vmatprep.subr.mxu0 0.0
        %349 = vmatpush1.msra.mxu0 0.0
        %350 = vmatprep.subr.mxu0 0.0
        %351 = vmatpush1.msra.mxu0 0.0
        %352 = vmatprep.subr.mxu0 0.0
        %353 = vmatpush1.msra.mxu0 0.0
        %354 = vmatprep.subr.mxu0 0.0
        %355 = vmatpush1.msra.mxu0 0.0
        %356 = vmatprep.subr.mxu0 0.0
        %357 = vmatpush1.msra.mxu0 0.0
        %358 = vmatprep.subr.mxu0 0.0
        %359 = vmatpush1.msra.mxu0 0.0
        %360 = vmatprep.subr.mxu0 0.0
        %361 = vmatpush1.msra.mxu0 0.0
        %362 = vmatprep.subr.mxu0 0.0
        %363 = vmatpush1.msra.mxu0 0.0
        %364 = vmatprep.subr.mxu0 0.0
        %365 = vmatpush1.msra.mxu0 0.0
        %366 = vmatprep.subr.mxu0 0.0
        %367 = vmatpush1.msra.mxu0 0.0
        %368 = vmatprep.subr.mxu0 0.0
        %369 = vmatpush1.msra.mxu0 0.0
        %370 = vmatprep.subr.mxu0 0.0
        %371 = vmatpush1.msra.mxu0 0.0
        %372 = vmatprep.subr.mxu0 0.0
        %373 = vmatpush1.msra.mxu0 0.0
        %374 = vmatprep.subr.mxu0 0.0
        %375 = vmatpush1.msra.mxu0 0.0
        %376 = vmatprep.subr.mxu0 0.0
        %377 = vmatpush1.msra.mxu0 0.0
        %378 = vmatprep.subr.mxu0 0.0
        %379 = vmatpush1.msra.mxu0 %v346
        %380 = vmatprep.subr.mxu0 0.0
        %381 = vmatpush2.msra.mxu0 0.0
        %382 = vmatprep.subr.mxu0 0.0
        %383 = vmatpush2.msra.mxu0 0.0
        %384 = vmatprep.subr.mxu0 0.0
        %385 = vmatpush2.msra.mxu0 0.0
        %386 = vmatprep.subr.mxu0 0.0
        %387 = vmatpush2.msra.mxu0 0.0
        %388 = vmatprep.subr.mxu0 0.0
        %389 = vmatpush2.msra.mxu0 0.0
        %390 = vmatprep.subr.mxu0 0.0
        %391 = vmatpush2.msra.mxu0 0.0
        %392 = vmatprep.subr.mxu0 0.0
        %393 = vmatpush2.msra.mxu0 0.0
        %394 = vmatprep.subr.mxu0 0.0
        %395 = vmatpush2.msra.mxu0 0.0
        %396 = vmatprep.subr.mxu0 0.0
        %397 = vmatpush2.msra.mxu0 0.0
        %398 = vmatprep.subr.mxu0 0.0
        %399 = vmatpush2.msra.mxu0 0.0
        %400 = vmatprep.subr.mxu0 0.0
        %401 = vmatpush2.msra.mxu0 0.0
        %402 = vmatprep.subr.mxu0 0.0
        %403 = vmatpush2.msra.mxu0 0.0
        %404 = vmatprep.subr.mxu0 0.0
        %405 = vmatpush2.msra.mxu0 0.0
        %406 = vmatprep.subr.mxu0 0.0
        %407 = vmatpush2.msra.mxu0 0.0
        %408 = vmatprep.subr.mxu0 0.0
        %409 = vmatpush2.msra.mxu0 0.0
        %410 = vmatprep.subr.mxu0 0.0
        %411 = vmatpush2.msra.mxu0 0.0
        %412 = vmatprep.mubr.f32.mxu0 0.0
        %413 = vmatmul.mubr.f32.gmra.mxu0 %v342
        %v414 = vpop.f32.mrf.mxu0
        %v415 = vadd.f32 0.0, %v414
        %v416 = vpop.f32.mrf.mxu0
        %417 = vdwg.mxu0
        %v419 = vsel %vm340, %v337, 0
        %v422 = vsel %vm344, %v313, 0
        %424 = vmatprep.subr.mxu0 0.0
        %425 = vmatpush1.msra.mxu0 0.0
        %426 = vmatprep.subr.mxu0 0.0
        %427 = vmatpush1.msra.mxu0 0.0
        %428 = vmatprep.subr.mxu0 0.0
        %429 = vmatpush1.msra.mxu0 0.0
        %430 = vmatprep.subr.mxu0 0.0
        %431 = vmatpush1.msra.mxu0 0.0
        %432 = vmatprep.subr.mxu0 0.0
        %433 = vmatpush1.msra.mxu0 0.0
        %434 = vmatprep.subr.mxu0 0.0
        %435 = vmatpush1.msra.mxu0 0.0
        %436 = vmatprep.subr.mxu0 0.0
        %437 = vmatpush1.msra.mxu0 0.0
        %438 = vmatprep.subr.mxu0 0.0
        %439 = vmatpush1.msra.mxu0 0.0
        %440 = vmatprep.subr.mxu0 0.0
        %441 = vmatpush1.msra.mxu0 0.0
        %442 = vmatprep.subr.mxu0 0.0
        %443 = vmatpush1.msra.mxu0 0.0
        %444 = vmatprep.subr.mxu0 0.0
        %445 = vmatpush1.msra.mxu0 0.0
        %446 = vmatprep.subr.mxu0 0.0
        %447 = vmatpush1.msra.mxu0 0.0
        %448 = vmatprep.subr.mxu0 0.0
        %449 = vmatpush1.msra.mxu0 0.0
        %450 = vmatprep.subr.mxu0 0.0
        %451 = vmatpush1.msra.mxu0 0.0
        %452 = vmatprep.subr.mxu0 0.0
        %453 = vmatpush1.msra.mxu0 0.0
        %454 = vmatprep.subr.mxu0 0.0
        %455 = vmatpush1.msra.mxu0 %v422
        %456 = vmatprep.subr.mxu0 0.0
        %457 = vmatpush2.msra.mxu0 0.0
        %458 = vmatprep.subr.mxu0 0.0
        %459 = vmatpush2.msra.mxu0 0.0
        %460 = vmatprep.subr.mxu0 0.0
        %461 = vmatpush2.msra.mxu0 0.0
        %462 = vmatprep.subr.mxu0 0.0
        %463 = vmatpush2.msra.mxu0 0.0
        %464 = vmatprep.subr.mxu0 0.0
        %465 = vmatpush2.msra.mxu0 0.0
        %466 = vmatprep.subr.mxu0 0.0
        %467 = vmatpush2.msra.mxu0 0.0
        %468 = vmatprep.subr.mxu0 0.0
        %469 = vmatpush2.msra.mxu0 0.0
        %470 = vmatprep.subr.mxu0 0.0
        %471 = vmatpush2.msra.mxu0 0.0
        %472 = vmatprep.subr.mxu0 0.0
        %473 = vmatpush2.msra.mxu0 0.0
        %474 = vmatprep.subr.mxu0 0.0
        %475 = vmatpush2.msra.mxu0 0.0
        %476 = vmatprep.subr.mxu0 0.0
        %477 = vmatpush2.msra.mxu0 0.0
        %478 = vmatprep.subr.mxu0 0.0
        %479 = vmatpush2.msra.mxu0 0.0
        %480 = vmatprep.subr.mxu0 0.0
        %481 = vmatpush2.msra.mxu0 0.0
        %482 = vmatprep.subr.mxu0 0.0
        %483 = vmatpush2.msra.mxu0 0.0
        %484 = vmatprep.subr.mxu0 0.0
        %485 = vmatpush2.msra.mxu0 0.0
        %486 = vmatprep.subr.mxu0 0.0
        %487 = vmatpush2.msra.mxu0 0.0
        %488 = vmatprep.mubr.f32.mxu0 0.0
        %489 = vmatmul.mubr.f32.gmra.mxu0 %v419
        %v490 = vpop.f32.mrf.mxu0
        %v491 = vadd.f32 %v415, %v490
        %v492 = vpop.f32.mrf.mxu0
        %493 = vdwg.mxu0
        %v494 = vld [vmem:[%s3] sm:$0xf]
        %v496 = vsel %vm340, %v494, 0
        %v499 = vsel %vm344, %v335, 0
        %501 = vmatprep.subr.mxu0 0.0
        %502 = vmatpush1.msra.mxu0 0.0
        %503 = vmatprep.subr.mxu0 0.0
        %504 = vmatpush1.msra.mxu0 0.0
        %505 = vmatprep.subr.mxu0 0.0
        %506 = vmatpush1.msra.mxu0 0.0
        %507 = vmatprep.subr.mxu0 0.0
        %508 = vmatpush1.msra.mxu0 0.0
        %509 = vmatprep.subr.mxu0 0.0
        %510 = vmatpush1.msra.mxu0 0.0
        %511 = vmatprep.subr.mxu0 0.0
        %512 = vmatpush1.msra.mxu0 0.0
        %513 = vmatprep.subr.mxu0 0.0
        %514 = vmatpush1.msra.mxu0 0.0
        %515 = vmatprep.subr.mxu0 0.0
        %516 = vmatpush1.msra.mxu0 0.0
        %517 = vmatprep.subr.mxu0 0.0
        %518 = vmatpush1.msra.mxu0 0.0
        %519 = vmatprep.subr.mxu0 0.0
        %520 = vmatpush1.msra.mxu0 0.0
        %521 = vmatprep.subr.mxu0 0.0
        %522 = vmatpush1.msra.mxu0 0.0
        %523 = vmatprep.subr.mxu0 0.0
        %524 = vmatpush1.msra.mxu0 0.0
        %525 = vmatprep.subr.mxu0 0.0
        %526 = vmatpush1.msra.mxu0 0.0
        %527 = vmatprep.subr.mxu0 0.0
        %528 = vmatpush1.msra.mxu0 0.0
        %529 = vmatprep.subr.mxu0 0.0
        %530 = vmatpush1.msra.mxu0 0.0
        %531 = vmatprep.subr.mxu0 0.0
        %532 = vmatpush1.msra.mxu0 %v499
        %533 = vmatprep.subr.mxu0 0.0
        %534 = vmatpush2.msra.mxu0 0.0
        %535 = vmatprep.subr.mxu0 0.0
        %536 = vmatpush2.msra.mxu0 0.0
        %537 = vmatprep.subr.mxu0 0.0
        %538 = vmatpush2.msra.mxu0 0.0
        %539 = vmatprep.subr.mxu0 0.0
        %540 = vmatpush2.msra.mxu0 0.0
        %541 = vmatprep.subr.mxu0 0.0
        %542 = vmatpush2.msra.mxu0 0.0
        %543 = vmatprep.subr.mxu0 0.0
        %544 = vmatpush2.msra.mxu0 0.0
        %545 = vmatprep.subr.mxu0 0.0
        %546 = vmatpush2.msra.mxu0 0.0
        %547 = vmatprep.subr.mxu0 0.0
        %548 = vmatpush2.msra.mxu0 0.0
        %549 = vmatprep.subr.mxu0 0.0
        %550 = vmatpush2.msra.mxu0 0.0
        %551 = vmatprep.subr.mxu0 0.0
        %552 = vmatpush2.msra.mxu0 0.0
        %553 = vmatprep.subr.mxu0 0.0
        %554 = vmatpush2.msra.mxu0 0.0
        %555 = vmatprep.subr.mxu0 0.0
        %556 = vmatpush2.msra.mxu0 0.0
        %557 = vmatprep.subr.mxu0 0.0
        %558 = vmatpush2.msra.mxu0 0.0
        %559 = vmatprep.subr.mxu0 0.0
        %560 = vmatpush2.msra.mxu0 0.0
        %561 = vmatprep.subr.mxu0 0.0
        %562 = vmatpush2.msra.mxu0 0.0
        %563 = vmatprep.subr.mxu0 0.0
        %564 = vmatpush2.msra.mxu0 0.0
        %565 = vmatprep.mubr.f32.mxu0 0.0
        %566 = vmatmul.mubr.f32.gmra.mxu0 %v496
        %v567 = vpop.f32.mrf.mxu0
        %v568 = vadd.f32 0.0, %v567
        %v569 = vpop.f32.mrf.mxu0
        %570 = vdwg.mxu0
        %v571 = vadd.f32 %v491, %v568
        %v572 = vld [vmem:[%s4] sm:$0xf]
        %574 = vset.pattern.permute.xlu0 0
        %575 = vperm.xlu0 %574, %v572
        %v576 = vpop.permute.xlu0 %575
        %v578 = vadd.f32 %v571, %v576
        %vm579 = vcmask 60416
        %580 = vst.msk [vmem:[%s298] sm:$0xf] %vm579, %v578
        %s581 = sand.u32 %s170, 1
        %s582 = scalar_lea.sflag [#allocation4], %s581
        %s583 = sand.u32 %s170, 1
        %s584 = smul.addr %s583, 4
        %s585 = scalar_lea.vmem [#allocation5], %s584
        // Predicated region
        $region45: #{tpu_custom_call.1} parent=39 // pred_check
          %p586 = pneg %p180
        $region46: #{tpu_custom_call.1} parent=39 // pred_check_branch
          %588 = sbr.rel (%p586) target = $region48
        $region47: #{tpu_custom_call.1} parent=39 // pred_region
          %s590 = ssub.s32 64, 64
          %591 = vsyncadd %s582, %s590
          %s592 = sadd.s32 %s27, %s26
          %s593 = smul.addr %s592, 64
          %s594 = scalar_lea.hbm %s5, %s593
          %s596 = sshll.u32 %s585, 4
          %s597 = int_to_ptr.vmem [resolvable:$true] %s596
          %599 = dma.vmem_to_hbm [thread:$0]  %s597, 64, %s594, %s582
        $region48: #{tpu_custom_call.1} parent=39 // pred_fallthru
          _
      $region40: #{tpu_custom_call.1} parent=5 // pred_fallthru
        _
      %p600 = scmp.le.s32.totalorder 2, %s17
      // Predicated region
      $region49: #{tpu_custom_call.1} parent=5 // pred_check
        %p601 = pneg %p600
      $region50: #{tpu_custom_call.1} parent=5 // pred_check_branch
        %603 = sbr.rel (%p601) target = $region52
      $region51: #{tpu_custom_call.1} parent=5 // pred_region
        %s604 = ssub.s32 %s17, 2
        // Predicated region
        $region53: #{tpu_custom_call.1} parent=51 // pred_check
          %p605 = pneg %p186
        $region54: #{tpu_custom_call.1} parent=51 // pred_check_branch
          %607 = sbr.rel (%p605) target = $region56
        $region55: #{tpu_custom_call.1} parent=51 // pred_region
          %s608 = sand.u32 %s171, 1
          %s609 = scalar_lea.sflag [#allocation4], %s608
          %s610 = sand.u32 %s171, 1
          %s611 = smul.addr %s610, 4
          %s612 = scalar_lea.vmem [#allocation5], %s611
          %613 = dma.done %s609, 64
        $region56: #{tpu_custom_call.1} parent=51 // pred_fallthru
          _
      $region52: #{tpu_custom_call.1} parent=5 // pred_fallthru
        _
    $region6: #{tpu_custom_call.1} parent=1 // loop_footer
      %s21 = sadd.s32 1, %s17
    $region7: #{tpu_custom_call.1} parent=1 // loop_footer_branch
      %16 = sbr.rel target = $region3
    $region8: #{tpu_custom_call.1} parent=1 // loop_exit
      _
    %614 = vsyncpa [#allocation3], 1
    %s615 = scalar_lea.sflag [#allocation3], 1
    %616 = vsyncpa %s615, 1
    %617 = vsyncpa [#allocation4], 1
    %s618 = scalar_lea.sflag [#allocation4], 1
    %619 = vsyncpa %s618, 1

</llo_original>
